<compile_context>
chip_gen: v5e
topology: v5e:2x2
jax: 0.10.0
libtpu: 0.0.40
codegen_flags: <defaults>
</compile_context>

<pallas_src>
import functools

import jax
import jax.numpy as jnp
from jax.experimental import pallas as pl
from jax.experimental.pallas import tpu as pltpu

_LANES = 128


# ----------------------------------------------------------------------------
# Pooling kernels
# ----------------------------------------------------------------------------
def _pool_kernel_single(x_ref, out_ref, *, inv_hw):
    """Single-k-step fast path: reduce the whole (TR, HW) block directly."""
    x = x_ref[...].astype(jnp.float32)
    out_ref[:, 0:1] = jnp.sum(x, axis=1, keepdims=True) * inv_hw
    out_ref[:, 1:2] = jnp.max(x, axis=1, keepdims=True)


def _pool_kernel_multi(x_ref, out_ref, sum_acc, max_acc, *, hw, thw, inv_hw):
    """Multi-k-step path: fold (TR, THW) tiles into (TR, 128) accumulators."""
    k = pl.program_id(1)
    last = pl.num_programs(1) - 1
    nchunks = thw // _LANES          # THW is a multiple of 128 by construction
    rem = hw % thw                   # static

    @pl.when(k == 0)
    def _init():
        sum_acc[...] = jnp.zeros_like(sum_acc)
        max_acc[...] = jnp.full_like(max_acc, -jnp.inf)

    def fold(masked):
        ps = None
        pm = None
        for c in range(nchunks):     # static unrolled, in-register partials
            sl = x_ref[:, c * _LANES:(c + 1) * _LANES].astype(jnp.float32)
            if masked:
                lane = jax.lax.broadcasted_iota(jnp.int32, sl.shape, 1)
                valid = (k * thw + c * _LANES + lane) < hw
                sl_s = jnp.where(valid, sl, 0.0)
                sl_m = jnp.where(valid, sl, -jnp.inf)
            else:
                sl_s = sl
                sl_m = sl
            ps = sl_s if ps is None else ps + sl_s
            pm = sl_m if pm is None else jnp.maximum(pm, sl_m)
        # Touch each accumulator once per step.
        sum_acc[...] = sum_acc[...] + ps
        max_acc[...] = jnp.maximum(max_acc[...], pm)

    if rem == 0:
        fold(False)
    else:
        # Masked fold only for the (partial) last k step; steady state unmasked.
        @pl.when(k < last)
        def _steady():
            fold(False)

        @pl.when(k == last)
        def _tail():
            fold(True)

    @pl.when(k == last)
    def _epilogue():
        out_ref[:, 0:1] = jnp.sum(sum_acc[...], axis=1, keepdims=True) * inv_hw
        out_ref[:, 1:2] = jnp.max(max_acc[...], axis=1, keepdims=True)


# ----------------------------------------------------------------------------
# Tile selection
# ----------------------------------------------------------------------------
def _pick_tiles(R, HW, itemsize, max_tile_rows, max_tile_hw):
    # Dtype-aware sublane multiple (rows pack along sublanes below 32-bit).
    sub = 8 * max(1, 4 // itemsize)
    # Cap TR at 128: keeps the in-register fold under ~48 vregs and makes it
    # easy to have >= 2 row tiles for small R (v7x megacore sharding).
    cap = max(sub, (min(max_tile_rows, 128) // sub) * sub)
    if R <= sub:
        TR = R
    else:
        half = ((R + 1) // 2 + sub - 1) // sub * sub   # ceil(R/2) -> sublane mult
        TR = max(sub, min(cap, half))

    # Conservative VMEM budget valid on every generation (v7x scoped default
    # is 32 MiB): double-buffered input tile + accumulator scratch <= 24 MiB.
    budget = 24 * 1024 * 1024
    scratch = 2 * TR * _LANES * 4

    def fits(thw):
        return 2 * TR * thw * itemsize + scratch <= budget

    want_single = (max_tile_hw is None) or (max_tile_hw >= HW)
    if HW <= _LANES or (want_single and fits(HW)):
        THW = HW                                       # single k step
    else:
        limit = HW if max_tile_hw is None else min(max_tile_hw, HW)
        limit = max(_LANES, min(limit, 4096))
        THW = (limit // _LANES) * _LANES
        while THW > _LANES and not fits(THW):
            THW -= _LANES
        THW = max(_LANES, THW)
    return TR, THW


# ----------------------------------------------------------------------------
# Wrapper
# ----------------------------------------------------------------------------
def channel_attention(x_nchw, w1, w2, *, max_tile_rows=128, max_tile_hw=None):
    """x_nchw: (B, C, H, W); w1: (C//r, C); w2: (C, C//r) (both bias-free 1x1).
    Returns the sigmoid channel attention of shape (B, C, 1, 1)."""
    B, C, H, W = x_nchw.shape
    R = B * C
    HW = H * W
    x_flat = x_nchw.reshape(R, HW)
    itemsize = x_flat.dtype.itemsize

    TR, THW = _pick_tiles(R, HW, itemsize, max_tile_rows, max_tile_hw)
    nr = pl.cdiv(R, TR)
    nk = pl.cdiv(HW, THW)

    cost = pl.CostEstimate(
        flops=2 * R * HW,                 # one add + one max-compare per element
        transcendentals=0,
        bytes_accessed=int(R * HW * itemsize + R * 2 * 4),
    )
    vmem_limit = 32 * 1024 * 1024

    if nk == 1:
        pooled = pl.pallas_call(
            functools.partial(_pool_kernel_single, inv_hw=1.0 / float(HW)),
            out_shape=jax.ShapeDtypeStruct((R, 2), jnp.float32),
            grid_spec=pltpu.PrefetchScalarGridSpec(
                num_scalar_prefetch=0,
                grid=(nr,),
                in_specs=[pl.BlockSpec((TR, THW), lambda r: (r, 0))],
                out_specs=pl.BlockSpec((TR, 2), lambda r: (r, 0))),
            compiler_params=pltpu.CompilerParams(
                dimension_semantics=("parallel",),
                vmem_limit_bytes=vmem_limit),
            cost_estimate=cost,
        )(x_flat)
    else:
        pooled = pl.pallas_call(
            functools.partial(_pool_kernel_multi, hw=HW, thw=THW,
                              inv_hw=1.0 / float(HW)),
            out_shape=jax.ShapeDtypeStruct((R, 2), jnp.float32),
            grid_spec=pltpu.PrefetchScalarGridSpec(
                num_scalar_prefetch=0,
                grid=(nr, nk),
                in_specs=[pl.BlockSpec((TR, THW), lambda r, k: (r, k))],
                out_specs=pl.BlockSpec((TR, 2), lambda r, k: (r, 0)),
                scratch_shapes=[pltpu.VMEM((TR, _LANES), jnp.float32),
                                pltpu.VMEM((TR, _LANES), jnp.float32)]),
            compiler_params=pltpu.CompilerParams(
                dimension_semantics=("parallel", "arbitrary"),
                vmem_limit_bytes=vmem_limit),
            cost_estimate=cost,
        )(x_flat)

    # Tiny shared MLP + sigmoid in plain jnp (degenerate MXU shapes; a second
    # pallas_call launch + HBM round trip costs more than it saves).
    avg = pooled[:, 0].reshape(B, C)
    mx = pooled[:, 1].reshape(B, C)
    w1f = w1.astype(jnp.float32)
    w2f = w2.astype(jnp.float32)
    h = jnp.maximum(avg @ w1f.T, 0.0) + jnp.maximum(mx @ w1f.T, 0.0)
    attn = jax.nn.sigmoid(h @ w2f.T)                  # exact: conv2 is bias-free
    return attn.astype(x_nchw.dtype).reshape(B, C, 1, 1)


# ----------------------------------------------------------------------------
# Pure-JAX reference mirroring the PyTorch forward.
# ----------------------------------------------------------------------------
def _reference(x_nchw, w1, w2):
    B, C, H, W = x_nchw.shape
    xf = x_nchw.astype(jnp.float32)
    avg = jnp.mean(xf, axis=(2, 3))
    mx = jnp.max(xf, axis=(2, 3))

    def mlp(v):
        h = jnp.maximum(v @ w1.astype(jnp.float32).T, 0.0)
        return h @ w2.astype(jnp.float32).T

    out = jax.nn.sigmoid(mlp(avg) + mlp(mx))
    return out.reshape(B, C, 1, 1).astype(x_nchw.dtype)


if __name__ == "__main__":
    key = jax.random.PRNGKey(0)

    # Case 1: B=2, C=64 (ratio 16 -> hidden 4), 32x32 spatial.
    # Single-k-step fast path; TR=64 -> 2 row tiles (megacore-friendly).
    B, C, H, W = 2, 64, 32, 32
    hidden = C // 16
    kx, k1, k2, key = jax.random.split(key, 4)
    x = jax.random.normal(kx, (B, C, H, W), dtype=jnp.float32)
    # Conv2d(C, C//r, 1, bias=False) weight -> (C//r, C)
    w1 = jax.random.normal(k1, (hidden, C), dtype=jnp.float32) / jnp.sqrt(C)
    # Conv2d(C//r, C, 1, bias=False) weight -> (C, C//r)
    w2 = jax.random.normal(k2, (C, hidden), dtype=jnp.float32) / jnp.sqrt(hidden)

    ref = _reference(x, w1, w2)
    out = jax.block_until_ready(channel_attention(x, w1, w2))
    assert out.shape == (B, C, 1, 1)
    assert jnp.allclose(out, ref, atol=1e-5, rtol=1e-5)

    # Case 2: same data, forced multi-k-step path with a partial last HW tile
    # (1024 % 384 != 0 -> exercises the masked tail fold + accumulators).
    out2 = jax.block_until_ready(channel_attention(x, w1, w2, max_tile_hw=384))
    assert jnp.allclose(out2, ref, atol=1e-5, rtol=1e-5)

    # Case 3: odd shapes — HW not a multiple of 128 (full-extent lane block),
    # different channel count.
    B3, C3, H3, W3 = 2, 48, 19, 17
    hidden3 = C3 // 16
    kx3, k13, k23, key = jax.random.split(key, 4)
    x3 = jax.random.normal(kx3, (B3, C3, H3, W3), dtype=jnp.float32)
    w13 = jax.random.normal(k13, (hidden3, C3), dtype=jnp.float32) / jnp.sqrt(C3)
    w23 = jax.random.normal(k23, (C3, hidden3), dtype=jnp.float32) / jnp.sqrt(hidden3)
    out3 = jax.block_until_ready(channel_attention(x3, w13, w23))
    assert jnp.allclose(out3, _reference(x3, w13, w23), atol=1e-5, rtol=1e-5)

    print("KERNEL_OK")
</pallas_src>

<mosaic_0001>
module attributes {stable_mosaic.version = 11 : i64} {
  func.func @_pool_kernel_single(%arg0: i32, %arg1: memref<64x1024xf32, #tpu.memory_space<vmem>>, %arg2: memref<64x2xf32, #tpu.memory_space<vmem>>) attributes {dimension_semantics = [#tpu.dimension_semantics<parallel>], iteration_bounds = array<i64: 2>, scalar_prefetch = 0 : i64, scratch_operands = 0 : i64, tpu.core_type = #tpu.core_type<tc>, window_params = [{transform_indices = @transform_0, window_bounds = array<i64: 64, 1024>}, {transform_indices = @transform_1, window_bounds = array<i64: 64, 2>}]} {
    %c0 = arith.constant 0 : index
    %c0_0 = arith.constant 0 : index
    %0 = vector.load %arg1[%c0, %c0_0] : memref<64x1024xf32, #tpu.memory_space<vmem>>, vector<64x1024xf32>
    %cst = arith.constant dense<0.000000e+00> : vector<64xf32>
    %1 = vector.multi_reduction <add>, %0, %cst [1] : vector<64x1024xf32> to vector<64xf32>
    %2 = vector.shape_cast %1 : vector<64xf32> to vector<64x1xf32>
    %cst_1 = arith.constant 9.765625E-4 : f32
    %3 = vector.broadcast %cst_1 : f32 to vector<64x1xf32>
    %4 = arith.mulf %2, %3 : vector<64x1xf32>
    %c0_2 = arith.constant 0 : index
    %c0_3 = arith.constant 0 : index
    %5 = vector.load %arg2[%c0_2, %c0_3] : memref<64x2xf32, #tpu.memory_space<vmem>>, vector<64x1xf32>
    tpu.vector_store %arg2[%c0_2, %c0_3], %4 {strides = array<i32>} : memref<64x2xf32, #tpu.memory_space<vmem>>, vector<64x1xf32>,
    %cst_4 = arith.constant dense<0xFF800000> : vector<64xf32>
    %6 = vector.multi_reduction <maximumf>, %0, %cst_4 [1] : vector<64x1024xf32> to vector<64xf32>
    %7 = vector.shape_cast %6 : vector<64xf32> to vector<64x1xf32>
    %c0_5 = arith.constant 0 : index
    %c1 = arith.constant 1 : index
    %8 = vector.load %arg2[%c0_5, %c1] : memref<64x2xf32, #tpu.memory_space<vmem>>, vector<64x1xf32>
    tpu.vector_store %arg2[%c0_5, %c1], %7 {strides = array<i32>} : memref<64x2xf32, #tpu.memory_space<vmem>>, vector<64x1xf32>,
    return
  }
  func.func @transform_0(%arg0: i32) -> (i32, i32) {
    %c0_i32 = arith.constant 0 : i32
    %c0_i32_0 = arith.constant 0 : i32
    return %arg0, %c0_i32 : i32, i32
  }
  func.func @transform_1(%arg0: i32) -> (i32, i32) {
    %c0_i32 = arith.constant 0 : i32
    %c0_i32_0 = arith.constant 0 : i32
    return %arg0, %c0_i32 : i32, i32
  }
}

</mosaic_0001>

<llo_original>
// kernel: tpu_custom_call.1
$region0: #{tpu_custom_call.1}
  #allocation0 [shape = 'u32[]', space=smem, size = 0x4, offset = 0x4, fixed_abs, tag = 'smem constant byte address 0x4 - core index']
  #allocation1 [shape = 'u32[72,128]{1,0:T(1,128)}', space=vmem, size = 0x9000, scoped, tag = 'internal scratch']
  %s0 = inlined_call_operand.hbm [shape: f32[128,1024], index: 0, kind: input, shape index: {}]
  %s1 = inlined_call_operand.vmem [shape: f32[128,2], index: 1, kind: output, shape index: {}]
  %s2 = sld [smem:[#allocation0]]
  $region41: #{tpu_custom_call.1} parent=0
    _
  %s4 = ssub.s32 1, %s2
  %s5 = scalar_select 0, %s4, %s2
  $region1: #{tpu_custom_call.1} parent=0
    #allocation2 [shape = 'u8[524288]{0}', space=vmem, size = 0x80000, scoped, tag = 'input window, operand 0']
    #allocation3 [shape = 's32[2]{0}', space=sflag, size = 0x8, scoped, tag = 'scoped memory for tpu_custom_call.1']
    %6 = vsyncpa [#allocation3], 0
    %s7 = scalar_lea.sflag [#allocation3], 1
    %8 = vsyncpa %s7, 0
    loop: start=0, step=1, limit=4
    $region2: #{tpu_custom_call.1} parent=1 // loop_pre_header
      _
    $region3: #{tpu_custom_call.1} parent=1 // loop_header
      %s10 = sphi 0, %s14
      %p11 = scmp.ge.s32.totalorder %s10, 4
      %s20 = sphi 0, %s22
      %s23 = sphi 0, %s20
      %s24 = sphi 0, %s23
      %s40 = sphi 0, %s24
      %s46 = sphi 0, %s48
      %s49 = sphi 0, %s46
      %s50 = sphi 0, %s49
      %s66 = sphi 0, %s50
    $region4: #{tpu_custom_call.1} parent=1 // loop_header_branch
      %13 = sbr.rel (%p11) target = $region8
    $region5: #{tpu_custom_call.1} parent=1 // loop_body
      %s15 = ssub.s32 %s10, 1
      %s16 = ssub.s32 %s10, 2
      %s17 = sadd.s32 %s10, 1
      %s18 = ssub.s32 %s10, %s17
      %p19 = scmp.eq.s32.totalorder %s18, 0
      %s21 = sadd.s32 %s20, 1
      %s22 = scalar_select %p19, %s20, %s21
      %p25 = pneg %p19
      %p26 = scmp.eq.s32.totalorder %s10, 1
      %p27 = por %p25, %p26
      %p28 = scmp.ne.s32.totalorder %s20, %s23
      %p29 = scmp.eq.s32.totalorder %s10, 0
      %p30 = por %p28, %p29
      %p31 = scmp.ne.s32.totalorder %s20, %s23
      %p32 = scmp.eq.s32.totalorder %s15, 1
      %p33 = por %p31, %p32
      %p34 = scmp.ne.s32.totalorder %s23, %s24
      %p35 = scmp.eq.s32.totalorder %s15, 0
      %p36 = por %p34, %p35
      %p37 = scmp.ne.s32.totalorder %s23, %s24
      %p38 = scmp.eq.s32.totalorder %s16, 1
      %p39 = por %p37, %p38
      %p41 = scmp.ne.s32.totalorder %s24, %s40
      %p42 = scmp.eq.s32.totalorder %s16, 0
      %p43 = por %p41, %p42
      %s44 = ssub.s32 %s10, %s17
      %p45 = scmp.eq.s32.totalorder %s44, 0
      %s47 = sadd.s32 %s46, 1
      %s48 = scalar_select %p45, %s46, %s47
      %p51 = pneg %p45
      %p52 = scmp.eq.s32.totalorder %s10, 1
      %p53 = por %p51, %p52
      %p54 = scmp.ne.s32.totalorder %s46, %s49
      %p55 = scmp.eq.s32.totalorder %s10, 0
      %p56 = por %p54, %p55
      %p57 = scmp.ne.s32.totalorder %s46, %s49
      %p58 = scmp.eq.s32.totalorder %s15, 1
      %p59 = por %p57, %p58
      %p60 = scmp.ne.s32.totalorder %s49, %s50
      %p61 = scmp.eq.s32.totalorder %s15, 0
      %p62 = por %p60, %p61
      %p63 = scmp.ne.s32.totalorder %s49, %s50
      %p64 = scmp.eq.s32.totalorder %s16, 1
      %p65 = por %p63, %p64
      %p67 = scmp.ne.s32.totalorder %s50, %s66
      %p68 = scmp.eq.s32.totalorder %s16, 0
      %p69 = por %p67, %p68
      %p70 = scmp.le.s32.totalorder 1, %s10
      %p71 = scmp.lt.s32.totalorder %s10, 3
      %p72 = pnand %p70, %p71
      %p73 = pneg %p72
      // Predicated region
      $region9: #{tpu_custom_call.1} parent=5 // pred_check
        _
      $region10: #{tpu_custom_call.1} parent=5 // pred_check_branch
        %75 = sbr.rel (%p72) target = $region12
      $region11: #{tpu_custom_call.1} parent=5 // pred_region
        %s76 = ssub.s32 %s10, 1
      $region12: #{tpu_custom_call.1} parent=5 // pred_fallthru
        _
      %p77 = scmp.lt.s32.totalorder %s10, 2
      // Predicated region
      $region13: #{tpu_custom_call.1} parent=5 // pred_check
        %p78 = pneg %p77
      $region14: #{tpu_custom_call.1} parent=5 // pred_check_branch
        %80 = sbr.rel (%p78) target = $region16
      $region15: #{tpu_custom_call.1} parent=5 // pred_region
        // Predicated region
        $region17: #{tpu_custom_call.1} parent=15 // pred_check
          %p81 = pneg %p30
        $region18: #{tpu_custom_call.1} parent=15 // pred_check_branch
          %83 = sbr.rel (%p81) target = $region20
        $region19: #{tpu_custom_call.1} parent=15 // pred_region
          %s84 = sand.u32 %s20, 1
          %s85 = scalar_lea.sflag [#allocation3], %s84
          %s86 = sand.u32 %s20, 1
          %s87 = smul.addr %s86, 512
          %s88 = scalar_lea.vmem [#allocation2], %s87
          %s89 = smul.u32 8, %s10
          %91 = vsyncadd %s85, 0
          %s92 = smul.addr %s89, 8
          %s93 = smul.addr %s92, 8
          %s94 = scalar_lea.hbm %s0, %s93
          %s95 = sshll.u32 %s94, 4
          %s96 = int_to_ptr.hbm [resolvable:$true] %s95
          %s97 = sshll.u32 %s88, 4
          %s98 = int_to_ptr.vmem [resolvable:$true] %s97
          %103 = dma.hbm_to_vmem [thread:$0]  %s96, 8192, %s98, %s85, 1024, 1024, 64
        $region20: #{tpu_custom_call.1} parent=15 // pred_fallthru
          _
      $region16: #{tpu_custom_call.1} parent=5 // pred_fallthru
        _
      %p104 = scmp.le.s32.totalorder 1, %s10
      %p105 = scmp.lt.s32.totalorder %s10, 3
      %p106 = pnand %p104, %p105
      %p107 = pneg %p106
      // Predicated region
      $region21: #{tpu_custom_call.1} parent=5 // pred_check
        _
      $region22: #{tpu_custom_call.1} parent=5 // pred_check_branch
        %109 = sbr.rel (%p106) target = $region24
      $region23: #{tpu_custom_call.1} parent=5 // pred_region
        %s110 = ssub.s32 %s10, 1
        %s111 = sand.u32 %s23, 1
        %s112 = scalar_lea.sflag [#allocation3], %s111
        %s113 = sand.u32 %s23, 1
        %s114 = smul.addr %s113, 512
        %s115 = scalar_lea.vmem [#allocation2], %s114
        // Predicated region
        $region25: #{tpu_custom_call.1} parent=23 // pred_check
          %p116 = pneg %p36
        $region26: #{tpu_custom_call.1} parent=23 // pred_check_branch
          %118 = sbr.rel (%p116) target = $region28
        $region27: #{tpu_custom_call.1} parent=23 // pred_region
          %120 = dma.done %s112, 8192
        $region28: #{tpu_custom_call.1} parent=23 // pred_fallthru
          _
        %s121 = sand.u32 %s23, 1
        %s122 = scalar_lea.sflag [#allocation3], %s121
        %s123 = sand.u32 %s23, 1
        %s124 = smul.addr %s123, 512
        %s125 = scalar_lea.vmem [#allocation2], %s124
        %p126 = pneg %p36
        %p127 = pneg %p33
        %p128 = pneg %p62
        %p129 = pneg %p59
        %s130 = smul.u32 8, %s15
        %p131 = scmp.lt.s32.totalorder %s130, 15
        %s132 = scalar_select %p131, %s130, 15
        %s133 = smul.addr %s132, 8
        %s134 = scalar_lea.vmem %s1, %s133
        %s135 = smul.u32 8, %s15
        %s136 = smul.u32 8, %s15
        %p137 = scmp.lt.s32.totalorder %s136, 15
        %s138 = scalar_select %p137, %s136, 15
        %s139 = smul.addr %s138, 8
        %s140 = scalar_lea.vmem %s1, %s139
        %s141 = smul.u32 8, %s15
        %v142 = vld [vmem:[%s115] sm:$0xff]
        %v143 = vld [vmem:[%s115 + $0x8] sm:$0xff]
        %v144 = vld [vmem:[%s115 + $0x10] sm:$0xff]
        %v145 = vld [vmem:[%s115 + $0x18] sm:$0xff]
        %v146 = vld [vmem:[%s115 + $0x20] sm:$0xff]
        %v147 = vld [vmem:[%s115 + $0x28] sm:$0xff]
        %v148 = vld [vmem:[%s115 + $0x30] sm:$0xff]
        %v149 = vld [vmem:[%s115 + $0x38] sm:$0xff]
        %v150 = vld [vmem:[%s115 + $0x40] sm:$0xff]
        %v151 = vld [vmem:[%s115 + $0x48] sm:$0xff]
        %v152 = vld [vmem:[%s115 + $0x50] sm:$0xff]
        %v153 = vld [vmem:[%s115 + $0x58] sm:$0xff]
        %v154 = vld [vmem:[%s115 + $0x60] sm:$0xff]
        %v155 = vld [vmem:[%s115 + $0x68] sm:$0xff]
        %v156 = vld [vmem:[%s115 + $0x70] sm:$0xff]
        %v157 = vld [vmem:[%s115 + $0x78] sm:$0xff]
        %v158 = vld [vmem:[%s115 + $0x80] sm:$0xff]
        %v159 = vld [vmem:[%s115 + $0x88] sm:$0xff]
        %v160 = vld [vmem:[%s115 + $0x90] sm:$0xff]
        %v161 = vld [vmem:[%s115 + $0x98] sm:$0xff]
        %v162 = vld [vmem:[%s115 + $0xa0] sm:$0xff]
        %v163 = vld [vmem:[%s115 + $0xa8] sm:$0xff]
        %v164 = vld [vmem:[%s115 + $0xb0] sm:$0xff]
        %v165 = vld [vmem:[%s115 + $0xb8] sm:$0xff]
        %v166 = vld [vmem:[%s115 + $0xc0] sm:$0xff]
        %v167 = vld [vmem:[%s115 + $0xc8] sm:$0xff]
        %v168 = vld [vmem:[%s115 + $0xd0] sm:$0xff]
        %v169 = vld [vmem:[%s115 + $0xd8] sm:$0xff]
        %v170 = vld [vmem:[%s115 + $0xe0] sm:$0xff]
        %v171 = vld [vmem:[%s115 + $0xe8] sm:$0xff]
        %v172 = vld [vmem:[%s115 + $0xf0] sm:$0xff]
        %v173 = vld [vmem:[%s115 + $0xf8] sm:$0xff]
        %v174 = vld [vmem:[%s115 + $0x100] sm:$0xff]
        %v175 = vld [vmem:[%s115 + $0x108] sm:$0xff]
        %v176 = vld [vmem:[%s115 + $0x110] sm:$0xff]
        %v177 = vld [vmem:[%s115 + $0x118] sm:$0xff]
        %v178 = vld [vmem:[%s115 + $0x120] sm:$0xff]
        %v179 = vld [vmem:[%s115 + $0x128] sm:$0xff]
        %v180 = vld [vmem:[%s115 + $0x130] sm:$0xff]
        %v181 = vld [vmem:[%s115 + $0x138] sm:$0xff]
        %v182 = vld [vmem:[%s115 + $0x140] sm:$0xff]
        %v183 = vld [vmem:[%s115 + $0x148] sm:$0xff]
        %v184 = vld [vmem:[%s115 + $0x150] sm:$0xff]
        %v185 = vld [vmem:[%s115 + $0x158] sm:$0xff]
        %v186 = vld [vmem:[%s115 + $0x160] sm:$0xff]
        %v187 = vld [vmem:[%s115 + $0x168] sm:$0xff]
        %v188 = vld [vmem:[%s115 + $0x170] sm:$0xff]
        %v189 = vld [vmem:[%s115 + $0x178] sm:$0xff]
        %v190 = vld [vmem:[%s115 + $0x180] sm:$0xff]
        %v191 = vld [vmem:[%s115 + $0x188] sm:$0xff]
        %v192 = vld [vmem:[%s115 + $0x190] sm:$0xff]
        %v193 = vld [vmem:[%s115 + $0x198] sm:$0xff]
        %v194 = vld [vmem:[%s115 + $0x1a0] sm:$0xff]
        %v195 = vld [vmem:[%s115 + $0x1a8] sm:$0xff]
        %v196 = vld [vmem:[%s115 + $0x1b0] sm:$0xff]
        %v197 = vld [vmem:[%s115 + $0x1b8] sm:$0xff]
        %v198 = vld [vmem:[%s115 + $0x1c0] sm:$0xff]
        %v199 = vld [vmem:[%s115 + $0x1c8] sm:$0xff]
        %v200 = vld [vmem:[%s115 + $0x1d0] sm:$0xff]
        %v201 = vld [vmem:[%s115 + $0x1d8] sm:$0xff]
        %v202 = vld [vmem:[%s115 + $0x1e0] sm:$0xff]
        %v203 = vld [vmem:[%s115 + $0x1e8] sm:$0xff]
        %v204 = vld [vmem:[%s115 + $0x1f0] sm:$0xff]
        %v205 = vld [vmem:[%s115 + $0x1f8] sm:$0xff]
        %v206 = vadd.f32 %v142, %v143
        %v207 = vadd.f32 %v206, %v144
        %v208 = vadd.f32 %v207, %v145
        %v209 = vadd.f32 %v208, %v146
        %v210 = vadd.f32 %v209, %v147
        %v211 = vadd.f32 %v210, %v148
        %v212 = vadd.f32 %v211, %v149
        %213 = vadd.xlane.f32.xlu0 %v212
        %v214 = vpop.xlane.xlu0 %213
        %v215 = vadd.f32 %v150, %v151
        %v216 = vadd.f32 %v215, %v152
        %v217 = vadd.f32 %v216, %v153
        %v218 = vadd.f32 %v217, %v154
        %v219 = vadd.f32 %v218, %v155
        %v220 = vadd.f32 %v219, %v156
        %v221 = vadd.f32 %v220, %v157
        %222 = vadd.xlane.f32.xlu0 %v221
        %v223 = vpop.xlane.xlu0 %222
        %v224 = vadd.f32 %v158, %v159
        %v225 = vadd.f32 %v224, %v160
        %v226 = vadd.f32 %v225, %v161
        %v227 = vadd.f32 %v226, %v162
        %v228 = vadd.f32 %v227, %v163
        %v229 = vadd.f32 %v228, %v164
        %v230 = vadd.f32 %v229, %v165
        %231 = vadd.xlane.f32.xlu0 %v230
        %v232 = vpop.xlane.xlu0 %231
        %v233 = vadd.f32 %v166, %v167
        %v234 = vadd.f32 %v233, %v168
        %v235 = vadd.f32 %v234, %v169
        %v236 = vadd.f32 %v235, %v170
        %v237 = vadd.f32 %v236, %v171
        %v238 = vadd.f32 %v237, %v172
        %v239 = vadd.f32 %v238, %v173
        %240 = vadd.xlane.f32.xlu0 %v239
        %v241 = vpop.xlane.xlu0 %240
        %v242 = vadd.f32 %v174, %v175
        %v243 = vadd.f32 %v242, %v176
        %v244 = vadd.f32 %v243, %v177
        %v245 = vadd.f32 %v244, %v178
        %v246 = vadd.f32 %v245, %v179
        %v247 = vadd.f32 %v246, %v180
        %v248 = vadd.f32 %v247, %v181
        %249 = vadd.xlane.f32.xlu0 %v248
        %v250 = vpop.xlane.xlu0 %249
        %v251 = vadd.f32 %v182, %v183
        %v252 = vadd.f32 %v251, %v184
        %v253 = vadd.f32 %v252, %v185
        %v254 = vadd.f32 %v253, %v186
        %v255 = vadd.f32 %v254, %v187
        %v256 = vadd.f32 %v255, %v188
        %v257 = vadd.f32 %v256, %v189
        %258 = vadd.xlane.f32.xlu0 %v257
        %v259 = vpop.xlane.xlu0 %258
        %v260 = vadd.f32 %v190, %v191
        %v261 = vadd.f32 %v260, %v192
        %v262 = vadd.f32 %v261, %v193
        %v263 = vadd.f32 %v262, %v194
        %v264 = vadd.f32 %v263, %v195
        %v265 = vadd.f32 %v264, %v196
        %v266 = vadd.f32 %v265, %v197
        %267 = vadd.xlane.f32.xlu0 %v266
        %v268 = vpop.xlane.xlu0 %267
        %v269 = vadd.f32 %v198, %v199
        %v270 = vadd.f32 %v269, %v200
        %v271 = vadd.f32 %v270, %v201
        %v272 = vadd.f32 %v271, %v202
        %v273 = vadd.f32 %v272, %v203
        %v274 = vadd.f32 %v273, %v204
        %v275 = vadd.f32 %v274, %v205
        %276 = vadd.xlane.f32.xlu0 %v275
        %v277 = vpop.xlane.xlu0 %276
        %v278 = vmul.f32 %v214, 0.0009765625
        %v279 = vmul.f32 %v223, 0.0009765625
        %v280 = vmul.f32 %v232, 0.0009765625
        %v281 = vmul.f32 %v241, 0.0009765625
        %v282 = vmul.f32 %v250, 0.0009765625
        %v283 = vmul.f32 %v259, 0.0009765625
        %v284 = vmul.f32 %v268, 0.0009765625
        %v285 = vmul.f32 %v277, 0.0009765625
        %vm286 = vcmask 7168
        %287 = vst.msk [vmem:[%s140] sm:$0xff] %vm286, %v278
        %288 = vst.msk [vmem:[%s140 + $0x8] sm:$0xff] %vm286, %v279
        %289 = vst.msk [vmem:[%s140 + $0x10] sm:$0xff] %vm286, %v280
        %290 = vst.msk [vmem:[%s140 + $0x18] sm:$0xff] %vm286, %v281
        %291 = vst.msk [vmem:[%s140 + $0x20] sm:$0xff] %vm286, %v282
        %292 = vst.msk [vmem:[%s140 + $0x28] sm:$0xff] %vm286, %v283
        %293 = vst.msk [vmem:[%s140 + $0x30] sm:$0xff] %vm286, %v284
        %294 = vst.msk [vmem:[%s140 + $0x38] sm:$0xff] %vm286, %v285
        %v295 = vmax.f32 %v142, %v143
        %v296 = vmax.f32 %v295, %v144
        %v297 = vmax.f32 %v296, %v145
        %v298 = vmax.f32 %v297, %v146
        %v299 = vmax.f32 %v298, %v147
        %v300 = vmax.f32 %v299, %v148
        %v301 = vmax.f32 %v300, %v149
        %302 = vmax.xlane.f32.xlu0 %v301
        %v303 = vpop.xlane.xlu0 %302
        %v304 = vmax.f32 %v150, %v151
        %v305 = vmax.f32 %v304, %v152
        %v306 = vmax.f32 %v305, %v153
        %v307 = vmax.f32 %v306, %v154
        %v308 = vmax.f32 %v307, %v155
        %v309 = vmax.f32 %v308, %v156
        %v310 = vmax.f32 %v309, %v157
        %311 = vmax.xlane.f32.xlu0 %v310
        %v312 = vpop.xlane.xlu0 %311
        %v313 = vmax.f32 %v158, %v159
        %v314 = vmax.f32 %v313, %v160
        %v315 = vmax.f32 %v314, %v161
        %v316 = vmax.f32 %v315, %v162
        %v317 = vmax.f32 %v316, %v163
        %v318 = vmax.f32 %v317, %v164
        %v319 = vmax.f32 %v318, %v165
        %320 = vmax.xlane.f32.xlu0 %v319
        %v321 = vpop.xlane.xlu0 %320
        %v322 = vmax.f32 %v166, %v167
        %v323 = vmax.f32 %v322, %v168
        %v324 = vmax.f32 %v323, %v169
        %v325 = vmax.f32 %v324, %v170
        %v326 = vmax.f32 %v325, %v171
        %v327 = vmax.f32 %v326, %v172
        %v328 = vmax.f32 %v327, %v173
        %329 = vmax.xlane.f32.xlu0 %v328
        %v330 = vpop.xlane.xlu0 %329
        %v331 = vmax.f32 %v174, %v175
        %v332 = vmax.f32 %v331, %v176
        %v333 = vmax.f32 %v332, %v177
        %v334 = vmax.f32 %v333, %v178
        %v335 = vmax.f32 %v334, %v179
        %v336 = vmax.f32 %v335, %v180
        %v337 = vmax.f32 %v336, %v181
        %338 = vmax.xlane.f32.xlu0 %v337
        %v339 = vpop.xlane.xlu0 %338
        %v340 = vmax.f32 %v182, %v183
        %v341 = vmax.f32 %v340, %v184
        %v342 = vmax.f32 %v341, %v185
        %v343 = vmax.f32 %v342, %v186
        %v344 = vmax.f32 %v343, %v187
        %v345 = vmax.f32 %v344, %v188
        %v346 = vmax.f32 %v345, %v189
        %347 = vmax.xlane.f32.xlu0 %v346
        %v348 = vpop.xlane.xlu0 %347
        %v349 = vmax.f32 %v190, %v191
        %v350 = vmax.f32 %v349, %v192
        %v351 = vmax.f32 %v350, %v193
        %v352 = vmax.f32 %v351, %v194
        %v353 = vmax.f32 %v352, %v195
        %v354 = vmax.f32 %v353, %v196
        %v355 = vmax.f32 %v354, %v197
        %356 = vmax.xlane.f32.xlu0 %v355
        %v357 = vpop.xlane.xlu0 %356
        %v358 = vmax.f32 %v198, %v199
        %v359 = vmax.f32 %v358, %v200
        %v360 = vmax.f32 %v359, %v201
        %v361 = vmax.f32 %v360, %v202
        %v362 = vmax.f32 %v361, %v203
        %v363 = vmax.f32 %v362, %v204
        %v364 = vmax.f32 %v363, %v205
        %365 = vmax.xlane.f32.xlu0 %v364
        %v366 = vpop.xlane.xlu0 %365
        %vm367 = vcmask 15368
        %368 = vst.msk [vmem:[%s140] sm:$0xff] %vm367, %v303
        %369 = vst.msk [vmem:[%s140 + $0x8] sm:$0xff] %vm367, %v312
        %370 = vst.msk [vmem:[%s140 + $0x10] sm:$0xff] %vm367, %v321
        %371 = vst.msk [vmem:[%s140 + $0x18] sm:$0xff] %vm367, %v330
        %372 = vst.msk [vmem:[%s140 + $0x20] sm:$0xff] %vm367, %v339
        %373 = vst.msk [vmem:[%s140 + $0x28] sm:$0xff] %vm367, %v348
        %374 = vst.msk [vmem:[%s140 + $0x30] sm:$0xff] %vm367, %v357
        %375 = vst.msk [vmem:[%s140 + $0x38] sm:$0xff] %vm367, %v366
        %s376 = smul.u32 8, %s15
        %p377 = scmp.lt.s32.totalorder %s376, 15
        %s378 = scalar_select %p377, %s376, 15
        %s379 = smul.addr %s378, 8
        %s380 = scalar_lea.vmem %s1, %s379
        // Predicated region
        $region29: #{tpu_custom_call.1} parent=23 // pred_check
          %p381 = pneg %p59
        $region30: #{tpu_custom_call.1} parent=23 // pred_check_branch
          %383 = sbr.rel (%p381) target = $region32
        $region31: #{tpu_custom_call.1} parent=23 // pred_region
          %s384 = smul.u32 8, %s15
        $region32: #{tpu_custom_call.1} parent=23 // pred_fallthru
          _
      $region24: #{tpu_custom_call.1} parent=5 // pred_fallthru
        _
      %p385 = scmp.le.s32.totalorder 2, %s10
      // Predicated region
      $region33: #{tpu_custom_call.1} parent=5 // pred_check
        %p386 = pneg %p385
      $region34: #{tpu_custom_call.1} parent=5 // pred_check_branch
        %388 = sbr.rel (%p386) target = $region36
      $region35: #{tpu_custom_call.1} parent=5 // pred_region
        %s389 = ssub.s32 %s10, 2
        // Predicated region
        $region37: #{tpu_custom_call.1} parent=35 // pred_check
          %p390 = pneg %p65
        $region38: #{tpu_custom_call.1} parent=35 // pred_check_branch
          %392 = sbr.rel (%p390) target = $region40
        $region39: #{tpu_custom_call.1} parent=35 // pred_region
          %s393 = smul.u32 8, %s16
          %p394 = scmp.lt.s32.totalorder %s393, 15
          %s395 = scalar_select %p394, %s393, 15
          %s396 = smul.addr %s395, 8
          %s397 = scalar_lea.vmem %s1, %s396
        $region40: #{tpu_custom_call.1} parent=35 // pred_fallthru
          _
      $region36: #{tpu_custom_call.1} parent=5 // pred_fallthru
        _
    $region6: #{tpu_custom_call.1} parent=1 // loop_footer
      %s14 = sadd.s32 1, %s10
    $region7: #{tpu_custom_call.1} parent=1 // loop_footer_branch
      %9 = sbr.rel target = $region3
    $region8: #{tpu_custom_call.1} parent=1 // loop_exit
      _
    %398 = vsyncpa [#allocation3], 1
    %s399 = scalar_lea.sflag [#allocation3], 1
    %400 = vsyncpa %s399, 1

</llo_original>
